<compile_context>
chip_gen: v7x
topology: tpu7x:2x2x1
jax: 0.10.0
libtpu: 0.0.40
codegen_flags: <defaults>
</compile_context>

<pallas_src>
import jax
import jax.numpy as jnp
from jax.experimental import pallas as pl
from jax.experimental.pallas import tpu as pltpu

LN_EPS = 1e-5
LANE = 128


# ------------------------------ Pallas kernel --------------------------------
def _make_patch_embed_kernel(use_norm: bool, eps: float):
    """Fused per (batch, token-tile) grid step:
         y = W @ patch_tile + b                 (MXU, f32 accumulation)
         y = LayerNorm_E(y) * gamma + beta      (optional, sublane/XLU reduce)
       Output is written directly in (E, tokens) layout (E on sublanes, tokens
       lane-dense), so no post-kernel slice/transpose or E padding is needed.
    """

    def kernel(p_ref, w_ref, b_ref, g_ref, bt_ref, o_ref):
        # p_ref : (1, K, TL)  patches  (K on sublanes, tokens on lanes)
        # w_ref : (E, K)      VMEM-resident projection weights
        # b/g/bt: (E, 1)      conv bias / LN gamma / LN beta (f32)
        # o_ref : (1, E, TL)
        y = jnp.dot(w_ref[...], p_ref[0],
                    preferred_element_type=jnp.float32)          # (E, TL) f32
        y = y + b_ref[...]
        if use_norm:
            # LayerNorm over embed dim == sublane axis; XLU reduction is
            # essentially free while the DMA engine streams the next tile.
            mu = jnp.mean(y, axis=0, keepdims=True)               # (1, TL)
            d = y - mu
            var = jnp.mean(d * d, axis=0, keepdims=True)          # (1, TL)
            y = d * jax.lax.rsqrt(var + eps) * g_ref[...] + bt_ref[...]
        o_ref[0] = y.astype(o_ref.dtype)

    return kernel


# ------------------------------ kernel wrapper --------------------------------
def patch_embed_matmul_ln(patches, wT, bias, gamma, beta, *, use_norm,
                          eps=LN_EPS, tile_l=2048, compute_dtype=None,
                          out_dtype=None):
    """patches: (B, K, L), wT: (E, K)  ->  (B, E, L) = LN(wT @ patch + b)."""
    B, K, L = patches.shape
    E = wT.shape[0]
    if out_dtype is None:
        out_dtype = patches.dtype
    if compute_dtype is not None:
        patches = patches.astype(compute_dtype)
        wT = wT.astype(compute_dtype)
    bias = bias.reshape(E, 1).astype(jnp.float32)
    gamma = gamma.reshape(E, 1).astype(jnp.float32)
    beta = beta.reshape(E, 1).astype(jnp.float32)

    # --- token tile (lane dim) selection -------------------------------------
    tile_l = max(LANE, (tile_l // LANE) * LANE)      # keep lane-aligned
    if L <= tile_l:
        t_l = L                                      # full extent (always legal)
    else:
        t_l = tile_l                                 # multiple of 128
    n_l = pl.cdiv(L, t_l)
    # v7x megacore: keep >= 2 parallel grid steps when there is enough work.
    if B * n_l < 2 and L >= 2 * LANE:
        t_l = LANE * pl.cdiv(L, 2 * LANE)
        n_l = pl.cdiv(L, t_l)
    # No padding of L: the trailing partial block is clipped by Pallas; the
    # garbage columns it computes are masked on store and LN is per-token.

    kernel = _make_patch_embed_kernel(use_norm, eps)

    out = pl.pallas_call(
        kernel,
        out_shape=jax.ShapeDtypeStruct((B, E, L), out_dtype),
        grid=(B, n_l),
        in_specs=[
            pl.BlockSpec((1, K, t_l), lambda b, j: (b, 0, j)),   # patch tile
            pl.BlockSpec((E, K), lambda b, j: (0, 0)),           # weights (resident)
            pl.BlockSpec((E, 1), lambda b, j: (0, 0)),           # conv bias
            pl.BlockSpec((E, 1), lambda b, j: (0, 0)),           # LN gamma
            pl.BlockSpec((E, 1), lambda b, j: (0, 0)),           # LN beta
        ],
        out_specs=pl.BlockSpec((1, E, t_l), lambda b, j: (b, 0, j)),
        compiler_params=pltpu.CompilerParams(
            dimension_semantics=("parallel", "parallel")),
    )(patches, wT, bias, gamma, beta)

    return out


# ------------------------------ PatchEmbed forward ----------------------------
def patch_embed_forward(x, w_conv, b_conv, gamma, beta, patch_size,
                        use_norm=True, tile_l=2048, compute_dtype=None):
    """Matches PatchEmbed.forward: returns (B, embed_dim, Wh, Ww)."""
    B, Cin, H, W = x.shape
    ph, pw = patch_size
    pad_h = (ph - H % ph) % ph
    pad_w = (pw - W % pw) % pw
    if pad_h or pad_w:
        x = jnp.pad(x, ((0, 0), (0, 0), (0, pad_h), (0, pad_w)))
    Hp, Wp = H + pad_h, W + pad_w
    Wh, Ww = Hp // ph, Wp // pw
    E = w_conv.shape[0]
    K = Cin * ph * pw
    L = Wh * Ww

    # im2col in (B, K, L) layout; K ordering (cin, kh, kw) matches Conv2d weight.
    # TODO(synk): fold this relayout into the kernel (needs lane-strided reads).
    patches = (x.reshape(B, Cin, Wh, ph, Ww, pw)
                 .transpose(0, 1, 3, 5, 2, 4)        # (B, Cin, ph, pw, Wh, Ww)
                 .reshape(B, K, L))
    wT = w_conv.reshape(E, K)                        # (E, K)

    y = patch_embed_matmul_ln(patches, wT, b_conv, gamma, beta,
                              use_norm=use_norm, tile_l=tile_l,
                              compute_dtype=compute_dtype,
                              out_dtype=x.dtype)     # (B, E, L)

    return y.reshape(B, E, Wh, Ww)                   # free dim-split reshape


# ------------------------------------ main ------------------------------------
if __name__ == "__main__":
    PS, E, CIN = 4, 96, 3

    def reference(x, w_conv, b_conv, gamma, beta, ps, use_norm):
        B, Cin, H, W = x.shape
        pad_h = (ps - H % ps) % ps
        pad_w = (ps - W % ps) % ps
        xp = jnp.pad(x, ((0, 0), (0, 0), (0, pad_h), (0, pad_w)))
        Wh, Ww = (H + pad_h) // ps, (W + pad_w) // ps
        ref = jax.lax.conv_general_dilated(
            xp, w_conv, window_strides=(ps, ps), padding="VALID",
            dimension_numbers=("NCHW", "OIHW", "NCHW"),
            precision=jax.lax.Precision.HIGHEST)
        ref = ref + b_conv[None, :, None, None]
        if use_norm:
            r = ref.reshape(B, E, Wh * Ww).transpose(0, 2, 1)
            mu = r.mean(-1, keepdims=True)
            var = ((r - mu) ** 2).mean(-1, keepdims=True)
            r = (r - mu) / jnp.sqrt(var + LN_EPS) * gamma + beta
            ref = r.transpose(0, 2, 1).reshape(B, E, Wh, Ww)
        return ref

    root = jax.random.PRNGKey(0)
    kx1, kx2, kw, kb, kg, kbt = jax.random.split(root, 6)
    w_conv = 0.02 * jax.random.normal(kw, (E, CIN, PS, PS), jnp.float32)
    b_conv = 0.02 * jax.random.normal(kb, (E,), jnp.float32)
    gamma = 1.0 + 0.1 * jax.random.normal(kg, (E,), jnp.float32)
    beta = 0.1 * jax.random.normal(kbt, (E,), jnp.float32)

    fwd = jax.jit(patch_embed_forward,
                  static_argnames=("patch_size", "use_norm", "tile_l",
                                   "compute_dtype"))

    # --- case 1: odd spatial size (exercises right/bottom padding), f32 ------
    x1 = jax.random.normal(kx1, (2, CIN, 17, 18), jnp.float32)
    out1 = jax.block_until_ready(
        fwd(x1, w_conv, b_conv, gamma, beta, patch_size=(PS, PS),
            use_norm=True))
    assert out1.shape == (2, E, 5, 5), out1.shape
    ref1 = reference(x1, w_conv, b_conv, gamma, beta, PS, True)
    err1 = float(jnp.max(jnp.abs(out1 - ref1)))
    assert err1 < 1e-2, f"f32 max_err={err1}"

    # --- case 2: bigger image, bf16 matmul inputs, multi-tile grid with a ----
    # --- partial trailing token block (L=272, tile=128 -> 3 tiles/batch). ----
    x2 = jax.random.normal(kx2, (2, CIN, 64, 68), jnp.float32)
    out2 = jax.block_until_ready(
        fwd(x2, w_conv, b_conv, gamma, beta, patch_size=(PS, PS),
            use_norm=True, tile_l=128, compute_dtype=jnp.bfloat16))
    assert out2.shape == (2, E, 16, 17), out2.shape
    ref2 = reference(x2, w_conv, b_conv, gamma, beta, PS, True)
    err2 = float(jnp.max(jnp.abs(out2 - ref2)))
    assert err2 < 1e-1, f"bf16 max_err={err2}"

    print("KERNEL_OK")
</pallas_src>

<mosaic_0001>
module attributes {stable_mosaic.version = 11 : i64} {
  func.func @kernel(%arg0: i32, %arg1: i32, %arg2: memref<1x48x25xf32, #tpu.memory_space<vmem>>, %arg3: memref<96x48xf32, #tpu.memory_space<vmem>>, %arg4: memref<96x1xf32, #tpu.memory_space<vmem>>, %arg5: memref<96x1xf32, #tpu.memory_space<vmem>>, %arg6: memref<96x1xf32, #tpu.memory_space<vmem>>, %arg7: memref<1x96x25xf32, #tpu.memory_space<vmem>>) attributes {dimension_semantics = [#tpu.dimension_semantics<parallel>, #tpu.dimension_semantics<parallel>], iteration_bounds = array<i64: 2, 1>, scalar_prefetch = 0 : i64, scratch_operands = 0 : i64, tpu.core_type = #tpu.core_type<tc>, window_params = [{transform_indices = @transform_0, window_bounds = array<i64: 1, 48, 25>}, {pipeline_mode = #tpu.pipeline_mode<synchronous>, transform_indices = @transform_1, window_bounds = array<i64: 96, 48>}, {pipeline_mode = #tpu.pipeline_mode<synchronous>, transform_indices = @transform_2, window_bounds = array<i64: 96, 1>}, {pipeline_mode = #tpu.pipeline_mode<synchronous>, transform_indices = @transform_3, window_bounds = array<i64: 96, 1>}, {pipeline_mode = #tpu.pipeline_mode<synchronous>, transform_indices = @transform_4, window_bounds = array<i64: 96, 1>}, {transform_indices = @transform_5, window_bounds = array<i64: 1, 96, 25>}]} {
    %c0 = arith.constant 0 : index
    %c0_0 = arith.constant 0 : index
    %0 = vector.load %arg3[%c0, %c0_0] : memref<96x48xf32, #tpu.memory_space<vmem>>, vector<96x48xf32>
    %c0_1 = arith.constant 0 : index
    %c0_2 = arith.constant 0 : index
    %c0_3 = arith.constant 0 : index
    %1 = vector.load %arg2[%c0_1, %c0_2, %c0_3] : memref<1x48x25xf32, #tpu.memory_space<vmem>>, vector<1x48x25xf32>
    %2 = vector.shape_cast %1 : vector<1x48x25xf32> to vector<48x25xf32>
    %cst = arith.constant dense<0.000000e+00> : vector<96x25xf32>
    %3 = tpu.matmul %0, %2, %cst {dimension_numbers = #tpu.dot_dimension_numbers<[1], [0], [0], [1], [0, 0, 1, 1], [], []>} : vector<96x48xf32>, vector<48x25xf32>, vector<96x25xf32> -> vector<96x25xf32>
    %c0_4 = arith.constant 0 : index
    %c0_5 = arith.constant 0 : index
    %4 = vector.load %arg4[%c0_4, %c0_5] : memref<96x1xf32, #tpu.memory_space<vmem>>, vector<96x1xf32>
    %5 = vector.broadcast %4 : vector<96x1xf32> to vector<96x25xf32>
    %6 = arith.addf %3, %5 : vector<96x25xf32>
    %cst_6 = arith.constant dense<0.000000e+00> : vector<25xf32>
    %7 = vector.multi_reduction <add>, %6, %cst_6 [0] : vector<96x25xf32> to vector<25xf32>
    %8 = vector.shape_cast %7 : vector<25xf32> to vector<1x25xf32>
    %cst_7 = arith.constant 9.600000e+01 : f32
    %9 = vector.broadcast %cst_7 : f32 to vector<1x25xf32>
    %10 = arith.divf %8, %9 : vector<1x25xf32>
    %11 = vector.broadcast %10 : vector<1x25xf32> to vector<96x25xf32>
    %12 = arith.subf %6, %11 : vector<96x25xf32>
    %13 = arith.mulf %12, %12 : vector<96x25xf32>
    %cst_8 = arith.constant dense<0.000000e+00> : vector<25xf32>
    %14 = vector.multi_reduction <add>, %13, %cst_8 [0] : vector<96x25xf32> to vector<25xf32>
    %15 = vector.shape_cast %14 : vector<25xf32> to vector<1x25xf32>
    %cst_9 = arith.constant 9.600000e+01 : f32
    %16 = vector.broadcast %cst_9 : f32 to vector<1x25xf32>
    %17 = arith.divf %15, %16 : vector<1x25xf32>
    %cst_10 = arith.constant 9.99999974E-6 : f32
    %18 = vector.broadcast %cst_10 : f32 to vector<1x25xf32>
    %19 = arith.addf %17, %18 : vector<1x25xf32>
    %20 = math.rsqrt %19 : vector<1x25xf32>
    %21 = vector.broadcast %20 : vector<1x25xf32> to vector<96x25xf32>
    %22 = arith.mulf %12, %21 : vector<96x25xf32>
    %c0_11 = arith.constant 0 : index
    %c0_12 = arith.constant 0 : index
    %23 = vector.load %arg5[%c0_11, %c0_12] : memref<96x1xf32, #tpu.memory_space<vmem>>, vector<96x1xf32>
    %24 = vector.broadcast %23 : vector<96x1xf32> to vector<96x25xf32>
    %25 = arith.mulf %22, %24 : vector<96x25xf32>
    %c0_13 = arith.constant 0 : index
    %c0_14 = arith.constant 0 : index
    %26 = vector.load %arg6[%c0_13, %c0_14] : memref<96x1xf32, #tpu.memory_space<vmem>>, vector<96x1xf32>
    %27 = vector.broadcast %26 : vector<96x1xf32> to vector<96x25xf32>
    %28 = arith.addf %25, %27 : vector<96x25xf32>
    %c0_15 = arith.constant 0 : index
    %c0_16 = arith.constant 0 : index
    %c0_17 = arith.constant 0 : index
    %29 = vector.load %arg7[%c0_15, %c0_16, %c0_17] : memref<1x96x25xf32, #tpu.memory_space<vmem>>, vector<1x96x25xf32>
    %30 = vector.shape_cast %29 : vector<1x96x25xf32> to vector<96x25xf32>
    %31 = vector.shape_cast %28 : vector<96x25xf32> to vector<1x96x25xf32>
    tpu.vector_store %arg7[%c0_15, %c0_16, %c0_17], %31 {strides = array<i32>} : memref<1x96x25xf32, #tpu.memory_space<vmem>>, vector<1x96x25xf32>,
    return
  }
  func.func @transform_0(%arg0: i32, %arg1: i32) -> (i32, i32, i32) {
    %c0_i32 = arith.constant 0 : i32
    %c0_i32_0 = arith.constant 0 : i32
    return %arg0, %c0_i32, %arg1 : i32, i32, i32
  }
  func.func @transform_1(%arg0: i32, %arg1: i32) -> (i32, i32) {
    %c0_i32 = arith.constant 0 : i32
    %c0_i32_0 = arith.constant 0 : i32
    %c0_i32_1 = arith.constant 0 : i32
    return %c0_i32, %c0_i32_0 : i32, i32
  }
  func.func @transform_2(%arg0: i32, %arg1: i32) -> (i32, i32) {
    %c0_i32 = arith.constant 0 : i32
    %c0_i32_0 = arith.constant 0 : i32
    %c0_i32_1 = arith.constant 0 : i32
    return %c0_i32, %c0_i32_0 : i32, i32
  }
  func.func @transform_3(%arg0: i32, %arg1: i32) -> (i32, i32) {
    %c0_i32 = arith.constant 0 : i32
    %c0_i32_0 = arith.constant 0 : i32
    %c0_i32_1 = arith.constant 0 : i32
    return %c0_i32, %c0_i32_0 : i32, i32
  }
  func.func @transform_4(%arg0: i32, %arg1: i32) -> (i32, i32) {
    %c0_i32 = arith.constant 0 : i32
    %c0_i32_0 = arith.constant 0 : i32
    %c0_i32_1 = arith.constant 0 : i32
    return %c0_i32, %c0_i32_0 : i32, i32
  }
  func.func @transform_5(%arg0: i32, %arg1: i32) -> (i32, i32, i32) {
    %c0_i32 = arith.constant 0 : i32
    %c0_i32_0 = arith.constant 0 : i32
    return %arg0, %c0_i32, %arg1 : i32, i32, i32
  }
}

</mosaic_0001>

<llo_original>
// kernel: patch_embed_forward.1
$region0: #{patch_embed_forward.1}
  #allocation0 [shape = 'u32[]', space=smem, size = 0x4, offset = 0x4, fixed_abs, tag = 'smem constant byte address 0x4 - core index']
  #allocation1 [shape = 'u32[144,128]{1,0:T(1,128)}', space=vmem, size = 0x12000, scoped, tag = 'internal scratch']
  %s0 = inlined_call_operand.vmem [shape: f32[2,48,25], index: 0, kind: input, shape index: {}]
  %s1 = inlined_call_operand.vmem [shape: f32[96,48], index: 1, kind: input, shape index: {}]
  %s2 = inlined_call_operand.vmem [shape: f32[96,1], index: 2, kind: input, shape index: {}]
  %s3 = inlined_call_operand.vmem [shape: f32[96,1], index: 3, kind: input, shape index: {}]
  %s4 = inlined_call_operand.vmem [shape: f32[96,1], index: 4, kind: input, shape index: {}]
  %s5 = inlined_call_operand.vmem [shape: f32[2,96,25], index: 5, kind: output, shape index: {}]
  %s6 = sld [smem:[#allocation0]]
  $region53: #{patch_embed_forward.1} parent=0
    _
  %s8 = ssub.s32 1, %s6
  %s9 = scalar_select 0, %s8, %s6
  loop: start=0, step=1, limit=4
  $region2: #{patch_embed_forward.1} parent=0 // loop_pre_header
    _
  $region3: #{patch_embed_forward.1} parent=0 // loop_header
    %s11 = sphi 0, %s15
    %p12 = scmp.ge.s32.totalorder %s11, 4
    %s18 = sphi 0, %s30
    %s19 = sphi 0, %s26
    %s20 = sphi 0, %s18
    %s21 = sphi 0, %s19
    %s22 = sphi 0, %s20
    %s23 = sphi 0, %s21
    %s35 = sphi 0, %s37
    %s38 = sphi 0, %s35
    %s39 = sphi 0, %s38
    %s55 = sphi 0, %s39
    %s59 = sphi 0, %s59
    %s61 = sphi 0, %s59
    %s62 = sphi 0, %s61
    %s76 = sphi 0, %s62
    %s80 = sphi 0, %s80
    %s82 = sphi 0, %s80
    %s83 = sphi 0, %s82
    %s97 = sphi 0, %s83
    %s101 = sphi 0, %s101
    %s103 = sphi 0, %s101
    %s104 = sphi 0, %s103
    %s118 = sphi 0, %s104
    %s122 = sphi 0, %s122
    %s124 = sphi 0, %s122
    %s125 = sphi 0, %s124
    %s139 = sphi 0, %s125
    %s147 = sphi 0, %s149
    %s150 = sphi 0, %s147
    %s151 = sphi 0, %s150
    %s167 = sphi 0, %s151
  $region4: #{patch_embed_forward.1} parent=0 // loop_header_branch
    %14 = sbr.rel (%p12) target = $region8
  $region5: #{patch_embed_forward.1} parent=0 // loop_body
    %s16 = ssub.s32 %s11, 1
    %s17 = ssub.s32 %s11, 2
    %s24 = sadd.s32 1, %s19
    %p25 = scmp.ge.s32.totalorder %s24, 1
    %s26 = scalar_select %p25, 0, %s24
    %s27 = sadd.s32 1, %s18
    %s28 = scalar_select %p25, %s27, %s18
    %p29 = scmp.ge.s32.totalorder %s28, 2
    %s30 = scalar_select %p29, 0, %s28
    %s31 = ssub.s32 %s18, %s30
    %s32 = ssub.s32 %s19, %s26
    %s33 = sor.u32 %s31, %s32
    %p34 = scmp.eq.s32.totalorder %s33, 0
    %s36 = sadd.s32 %s35, 1
    %s37 = scalar_select %p34, %s35, %s36
    %p40 = pneg %p34
    %p41 = scmp.eq.s32.totalorder %s11, 1
    %p42 = por %p40, %p41
    %p43 = scmp.ne.s32.totalorder %s35, %s38
    %p44 = scmp.eq.s32.totalorder %s11, 0
    %p45 = por %p43, %p44
    %p46 = scmp.ne.s32.totalorder %s35, %s38
    %p47 = scmp.eq.s32.totalorder %s16, 1
    %p48 = por %p46, %p47
    %p49 = scmp.ne.s32.totalorder %s38, %s39
    %p50 = scmp.eq.s32.totalorder %s16, 0
    %p51 = por %p49, %p50
    %p52 = scmp.ne.s32.totalorder %s38, %s39
    %p53 = scmp.eq.s32.totalorder %s17, 1
    %p54 = por %p52, %p53
    %p56 = scmp.ne.s32.totalorder %s39, %s55
    %p57 = scmp.eq.s32.totalorder %s17, 0
    %p58 = por %p56, %p57
    %s60 = sadd.s32 %s59, 1
    %p63 = scmp.eq.s32.totalorder %s11, 1
    %p64 = scmp.ne.s32.totalorder %s59, %s61
    %p65 = scmp.eq.s32.totalorder %s11, 0
    %p66 = por %p64, %p65
    %p67 = scmp.ne.s32.totalorder %s59, %s61
    %p68 = scmp.eq.s32.totalorder %s16, 1
    %p69 = por %p67, %p68
    %p70 = scmp.ne.s32.totalorder %s61, %s62
    %p71 = scmp.eq.s32.totalorder %s16, 0
    %p72 = por %p70, %p71
    %p73 = scmp.ne.s32.totalorder %s61, %s62
    %p74 = scmp.eq.s32.totalorder %s17, 1
    %p75 = por %p73, %p74
    %p77 = scmp.ne.s32.totalorder %s62, %s76
    %p78 = scmp.eq.s32.totalorder %s17, 0
    %p79 = por %p77, %p78
    %s81 = sadd.s32 %s80, 1
    %p84 = scmp.eq.s32.totalorder %s11, 1
    %p85 = scmp.ne.s32.totalorder %s80, %s82
    %p86 = scmp.eq.s32.totalorder %s11, 0
    %p87 = por %p85, %p86
    %p88 = scmp.ne.s32.totalorder %s80, %s82
    %p89 = scmp.eq.s32.totalorder %s16, 1
    %p90 = por %p88, %p89
    %p91 = scmp.ne.s32.totalorder %s82, %s83
    %p92 = scmp.eq.s32.totalorder %s16, 0
    %p93 = por %p91, %p92
    %p94 = scmp.ne.s32.totalorder %s82, %s83
    %p95 = scmp.eq.s32.totalorder %s17, 1
    %p96 = por %p94, %p95
    %p98 = scmp.ne.s32.totalorder %s83, %s97
    %p99 = scmp.eq.s32.totalorder %s17, 0
    %p100 = por %p98, %p99
    %s102 = sadd.s32 %s101, 1
    %p105 = scmp.eq.s32.totalorder %s11, 1
    %p106 = scmp.ne.s32.totalorder %s101, %s103
    %p107 = scmp.eq.s32.totalorder %s11, 0
    %p108 = por %p106, %p107
    %p109 = scmp.ne.s32.totalorder %s101, %s103
    %p110 = scmp.eq.s32.totalorder %s16, 1
    %p111 = por %p109, %p110
    %p112 = scmp.ne.s32.totalorder %s103, %s104
    %p113 = scmp.eq.s32.totalorder %s16, 0
    %p114 = por %p112, %p113
    %p115 = scmp.ne.s32.totalorder %s103, %s104
    %p116 = scmp.eq.s32.totalorder %s17, 1
    %p117 = por %p115, %p116
    %p119 = scmp.ne.s32.totalorder %s104, %s118
    %p120 = scmp.eq.s32.totalorder %s17, 0
    %p121 = por %p119, %p120
    %s123 = sadd.s32 %s122, 1
    %p126 = scmp.eq.s32.totalorder %s11, 1
    %p127 = scmp.ne.s32.totalorder %s122, %s124
    %p128 = scmp.eq.s32.totalorder %s11, 0
    %p129 = por %p127, %p128
    %p130 = scmp.ne.s32.totalorder %s122, %s124
    %p131 = scmp.eq.s32.totalorder %s16, 1
    %p132 = por %p130, %p131
    %p133 = scmp.ne.s32.totalorder %s124, %s125
    %p134 = scmp.eq.s32.totalorder %s16, 0
    %p135 = por %p133, %p134
    %p136 = scmp.ne.s32.totalorder %s124, %s125
    %p137 = scmp.eq.s32.totalorder %s17, 1
    %p138 = por %p136, %p137
    %p140 = scmp.ne.s32.totalorder %s125, %s139
    %p141 = scmp.eq.s32.totalorder %s17, 0
    %p142 = por %p140, %p141
    %s143 = ssub.s32 %s18, %s30
    %s144 = ssub.s32 %s19, %s26
    %s145 = sor.u32 %s143, %s144
    %p146 = scmp.eq.s32.totalorder %s145, 0
    %s148 = sadd.s32 %s147, 1
    %s149 = scalar_select %p146, %s147, %s148
    %p152 = pneg %p146
    %p153 = scmp.eq.s32.totalorder %s11, 1
    %p154 = por %p152, %p153
    %p155 = scmp.ne.s32.totalorder %s147, %s150
    %p156 = scmp.eq.s32.totalorder %s11, 0
    %p157 = por %p155, %p156
    %p158 = scmp.ne.s32.totalorder %s147, %s150
    %p159 = scmp.eq.s32.totalorder %s16, 1
    %p160 = por %p158, %p159
    %p161 = scmp.ne.s32.totalorder %s150, %s151
    %p162 = scmp.eq.s32.totalorder %s16, 0
    %p163 = por %p161, %p162
    %p164 = scmp.ne.s32.totalorder %s150, %s151
    %p165 = scmp.eq.s32.totalorder %s17, 1
    %p166 = por %p164, %p165
    %p168 = scmp.ne.s32.totalorder %s151, %s167
    %p169 = scmp.eq.s32.totalorder %s17, 0
    %p170 = por %p168, %p169
    %p171 = scmp.le.s32.totalorder 1, %s11
    %p172 = scmp.lt.s32.totalorder %s11, 3
    %p173 = pnand %p171, %p172
    %p174 = pneg %p173
    // Predicated region
    $region9: #{patch_embed_forward.1} parent=5 // pred_check
      _
    $region10: #{patch_embed_forward.1} parent=5 // pred_check_branch
      %176 = sbr.rel (%p173) target = $region12
    $region11: #{patch_embed_forward.1} parent=5 // pred_region
      %s177 = ssub.s32 %s11, 1
      // Predicated region
      $region13: #{patch_embed_forward.1} parent=11 // pred_check
        %p178 = pneg %p72
      $region14: #{patch_embed_forward.1} parent=11 // pred_check_branch
        %180 = sbr.rel (%p178) target = $region16
      $region15: #{patch_embed_forward.1} parent=11 // pred_region
        _
      $region16: #{patch_embed_forward.1} parent=11 // pred_fallthru
        _
      // Predicated region
      $region17: #{patch_embed_forward.1} parent=11 // pred_check
        %p181 = pneg %p93
      $region18: #{patch_embed_forward.1} parent=11 // pred_check_branch
        %183 = sbr.rel (%p181) target = $region20
      $region19: #{patch_embed_forward.1} parent=11 // pred_region
        _
      $region20: #{patch_embed_forward.1} parent=11 // pred_fallthru
        _
      // Predicated region
      $region21: #{patch_embed_forward.1} parent=11 // pred_check
        %p184 = pneg %p114
      $region22: #{patch_embed_forward.1} parent=11 // pred_check_branch
        %186 = sbr.rel (%p184) target = $region24
      $region23: #{patch_embed_forward.1} parent=11 // pred_region
        _
      $region24: #{patch_embed_forward.1} parent=11 // pred_fallthru
        _
      // Predicated region
      $region25: #{patch_embed_forward.1} parent=11 // pred_check
        %p187 = pneg %p135
      $region26: #{patch_embed_forward.1} parent=11 // pred_check_branch
        %189 = sbr.rel (%p187) target = $region28
      $region27: #{patch_embed_forward.1} parent=11 // pred_region
        _
      $region28: #{patch_embed_forward.1} parent=11 // pred_fallthru
        _
    $region12: #{patch_embed_forward.1} parent=5 // pred_fallthru
      _
    %p190 = scmp.lt.s32.totalorder %s11, 2
    // Predicated region
    $region29: #{patch_embed_forward.1} parent=5 // pred_check
      %p191 = pneg %p190
    $region30: #{patch_embed_forward.1} parent=5 // pred_check_branch
      %193 = sbr.rel (%p191) target = $region32
    $region31: #{patch_embed_forward.1} parent=5 // pred_region
      // Predicated region
      $region33: #{patch_embed_forward.1} parent=31 // pred_check
        %p194 = pneg %p45
      $region34: #{patch_embed_forward.1} parent=31 // pred_check_branch
        %196 = sbr.rel (%p194) target = $region36
      $region35: #{patch_embed_forward.1} parent=31 // pred_region
        %p197 = scmp.lt.s32.totalorder %s18, 1
        %s198 = scalar_select %p197, %s18, 1
        %p199 = scmp.lt.s32.totalorder %s19, 0
        %s200 = scalar_select %p199, %s19, 0
        %s201 = smul.addr %s198, 6
        %s202 = sadd.s32 %s200, %s201
        %s203 = smul.addr %s202, 8
        %s204 = scalar_lea.vmem %s0, %s203
      $region36: #{patch_embed_forward.1} parent=31 // pred_fallthru
        _
    $region32: #{patch_embed_forward.1} parent=5 // pred_fallthru
      _
    %p205 = scmp.le.s32.totalorder 1, %s11
    %p206 = scmp.lt.s32.totalorder %s11, 3
    %p207 = pnand %p205, %p206
    %p208 = pneg %p207
    // Predicated region
    $region37: #{patch_embed_forward.1} parent=5 // pred_check
      _
    $region38: #{patch_embed_forward.1} parent=5 // pred_check_branch
      %210 = sbr.rel (%p207) target = $region40
    $region39: #{patch_embed_forward.1} parent=5 // pred_region
      %s211 = ssub.s32 %s11, 1
      %p212 = scmp.lt.s32.totalorder %s20, 1
      %s213 = scalar_select %p212, %s20, 1
      %p214 = scmp.lt.s32.totalorder %s21, 0
      %s215 = scalar_select %p214, %s21, 0
      %s216 = smul.addr %s213, 6
      %s217 = sadd.s32 %s215, %s216
      %s218 = smul.addr %s217, 8
      %s219 = scalar_lea.vmem %s0, %s218
      %p220 = pneg %p51
      %p221 = pneg %p48
      %p222 = pneg %p72
      %p223 = pneg %p69
      %p224 = pneg %p93
      %p225 = pneg %p90
      %p226 = pneg %p114
      %p227 = pneg %p111
      %p228 = pneg %p135
      %p229 = pneg %p132
      %p230 = pneg %p163
      %p231 = pneg %p160
      %p232 = scmp.lt.s32.totalorder %s20, 1
      %s233 = scalar_select %p232, %s20, 1
      %p234 = scmp.lt.s32.totalorder %s21, 0
      %s235 = scalar_select %p234, %s21, 0
      %s236 = smul.addr %s233, 12
      %s237 = sadd.s32 %s235, %s236
      %s238 = smul.addr %s237, 8
      %s239 = scalar_lea.vmem %s5, %s238
      %p240 = scmp.lt.s32.totalorder %s20, 1
      %s241 = scalar_select %p240, %s20, 1
      %p242 = scmp.lt.s32.totalorder %s21, 0
      %s243 = scalar_select %p242, %s21, 0
      %s244 = smul.addr %s241, 6
      %s245 = sadd.s32 %s243, %s244
      %s246 = smul.addr %s245, 8
      %s247 = scalar_lea.vmem %s0, %s246
      %p248 = scmp.lt.s32.totalorder %s20, 1
      %s249 = scalar_select %p248, %s20, 1
      %p250 = scmp.lt.s32.totalorder %s21, 0
      %s251 = scalar_select %p250, %s21, 0
      %s252 = smul.addr %s249, 12
      %s253 = sadd.s32 %s251, %s252
      %s254 = smul.addr %s253, 8
      %s255 = scalar_lea.vmem %s5, %s254
      %v256 = vld [vmem:[%s1] sm:$0xff]
      %v257 = vld [vmem:[%s1 + $0x8] sm:$0xff]
      %v258 = vld [vmem:[%s1 + $0x10] sm:$0xff]
      %v259 = vld [vmem:[%s1 + $0x18] sm:$0xff]
      %v260 = vld [vmem:[%s1 + $0x20] sm:$0xff]
      %v261 = vld [vmem:[%s1 + $0x28] sm:$0xff]
      %v262 = vld [vmem:[%s1 + $0x30] sm:$0xff]
      %v263 = vld [vmem:[%s1 + $0x38] sm:$0xff]
      %v264 = vld [vmem:[%s1 + $0x40] sm:$0xff]
      %v265 = vld [vmem:[%s1 + $0x48] sm:$0xff]
      %v266 = vld [vmem:[%s1 + $0x50] sm:$0xff]
      %v267 = vld [vmem:[%s1 + $0x58] sm:$0xff]
      %v268 = vld [vmem:[%s247] sm:$0xff]
      %v269 = vld [vmem:[%s247 + $0x8] sm:$0xff]
      %v270 = vld [vmem:[%s247 + $0x10] sm:$0xff]
      %v271 = vld [vmem:[%s247 + $0x18] sm:$0xff]
      %v272 = vld [vmem:[%s247 + $0x20] sm:$0xff]
      %v273 = vld [vmem:[%s247 + $0x28] sm:$0xff]
      %v274 = vld [vmem:[%s2] sm:$0xff]
      %v275 = vld [vmem:[%s2 + $0x8] sm:$0xff]
      %v276 = vld [vmem:[%s2 + $0x10] sm:$0xff]
      %v277 = vld [vmem:[%s2 + $0x18] sm:$0xff]
      %v278 = vld [vmem:[%s2 + $0x20] sm:$0xff]
      %v279 = vld [vmem:[%s2 + $0x28] sm:$0xff]
      %v280 = vld [vmem:[%s2 + $0x30] sm:$0xff]
      %v281 = vld [vmem:[%s2 + $0x38] sm:$0xff]
      %v282 = vld [vmem:[%s2 + $0x40] sm:$0xff]
      %v283 = vld [vmem:[%s2 + $0x48] sm:$0xff]
      %v284 = vld [vmem:[%s2 + $0x50] sm:$0xff]
      %v285 = vld [vmem:[%s2 + $0x58] sm:$0xff]
      %287 = vset.pattern.permute.xlu0 0
      %288 = vperm.xlu0 %287, %v274
      %v289 = vpop.permute.xlu0 %288
      %292 = vset.pattern.permute.xlu0 0
      %293 = vperm.xlu0 %292, %v275
      %v294 = vpop.permute.xlu0 %293
      %297 = vset.pattern.permute.xlu0 0
      %298 = vperm.xlu0 %297, %v276
      %v299 = vpop.permute.xlu0 %298
      %302 = vset.pattern.permute.xlu0 0
      %303 = vperm.xlu0 %302, %v277
      %v304 = vpop.permute.xlu0 %303
      %307 = vset.pattern.permute.xlu0 0
      %308 = vperm.xlu0 %307, %v278
      %v309 = vpop.permute.xlu0 %308
      %312 = vset.pattern.permute.xlu0 0
      %313 = vperm.xlu0 %312, %v279
      %v314 = vpop.permute.xlu0 %313
      %317 = vset.pattern.permute.xlu0 0
      %318 = vperm.xlu0 %317, %v280
      %v319 = vpop.permute.xlu0 %318
      %322 = vset.pattern.permute.xlu0 0
      %323 = vperm.xlu0 %322, %v281
      %v324 = vpop.permute.xlu0 %323
      %327 = vset.pattern.permute.xlu0 0
      %328 = vperm.xlu0 %327, %v282
      %v329 = vpop.permute.xlu0 %328
      %332 = vset.pattern.permute.xlu0 0
      %333 = vperm.xlu0 %332, %v283
      %v334 = vpop.permute.xlu0 %333
      %337 = vset.pattern.permute.xlu0 0
      %338 = vperm.xlu0 %337, %v284
      %v339 = vpop.permute.xlu0 %338
      %342 = vset.pattern.permute.xlu0 0
      %343 = vperm.xlu0 %342, %v285
      %v344 = vpop.permute.xlu0 %343
      %vm346 = vcmask 392192
      %v348 = vsel %vm346, %v256, 0
      %v351 = vsel %vm346, %v257, 0
      %v354 = vsel %vm346, %v258, 0
      %v357 = vsel %vm346, %v259, 0
      %v360 = vsel %vm346, %v260, 0
      %v363 = vsel %vm346, %v261, 0
      %v366 = vsel %vm346, %v262, 0
      %v369 = vsel %vm346, %v263, 0
      %v372 = vsel %vm346, %v264, 0
      %v375 = vsel %vm346, %v265, 0
      %v378 = vsel %vm346, %v266, 0
      %v381 = vsel %vm346, %v267, 0
      %383 = vmatprep.subr.mxu0 0.0
      %384 = vmatpush1.msra.mxu0 %v268
      %385 = vmatprep.subr.mxu0 0.0
      %386 = vmatpush1.msra.mxu0 %v269
      %387 = vmatprep.subr.mxu0 0.0
      %388 = vmatpush1.msra.mxu0 %v270
      %389 = vmatprep.subr.mxu0 0.0
      %390 = vmatpush1.msra.mxu0 %v271
      %391 = vmatprep.subr.mxu0 0.0
      %392 = vmatpush1.msra.mxu0 %v272
      %393 = vmatprep.subr.mxu0 0.0
      %394 = vmatpush1.msra.mxu0 %v273
      %395 = vmatprep.subr.mxu0 0.0
      %396 = vmatpush1.msra.mxu0 0.0
      %397 = vmatprep.subr.mxu0 0.0
      %398 = vmatpush1.msra.mxu0 0.0
      %399 = vmatprep.subr.mxu0 0.0
      %400 = vmatpush1.msra.mxu0 0.0
      %401 = vmatprep.subr.mxu0 0.0
      %402 = vmatpush1.msra.mxu0 0.0
      %403 = vmatprep.subr.mxu0 0.0
      %404 = vmatpush1.msra.mxu0 0.0
      %405 = vmatprep.subr.mxu0 0.0
      %406 = vmatpush1.msra.mxu0 0.0
      %407 = vmatprep.subr.mxu0 0.0
      %408 = vmatpush1.msra.mxu0 0.0
      %409 = vmatprep.subr.mxu0 0.0
      %410 = vmatpush1.msra.mxu0 0.0
      %411 = vmatprep.subr.mxu0 0.0
      %412 = vmatpush1.msra.mxu0 0.0
      %413 = vmatprep.subr.mxu0 0.0
      %414 = vmatpush1.msra.mxu0 0.0
      %415 = vmatprep.subr.mxu0 0.0
      %416 = vmatpush1.msra.mxu0 0.0
      %417 = vmatprep.subr.mxu0 0.0
      %418 = vmatpush1.msra.mxu0 0.0
      %419 = vmatprep.subr.mxu0 0.0
      %420 = vmatpush1.msra.mxu0 0.0
      %421 = vmatprep.subr.mxu0 0.0
      %422 = vmatpush1.msra.mxu0 0.0
      %423 = vmatprep.subr.mxu0 0.0
      %424 = vmatpush1.msra.mxu0 0.0
      %425 = vmatprep.subr.mxu0 0.0
      %426 = vmatpush1.msra.mxu0 0.0
      %427 = vmatprep.subr.mxu0 0.0
      %428 = vmatpush1.msra.mxu0 0.0
      %429 = vmatprep.subr.mxu0 0.0
      %430 = vmatpush1.msra.mxu0 0.0
      %431 = vmatprep.subr.mxu0 0.0
      %432 = vmatpush1.msra.mxu0 0.0
      %433 = vmatprep.subr.mxu0 0.0
      %434 = vmatpush1.msra.mxu0 0.0
      %435 = vmatprep.subr.mxu0 0.0
      %436 = vmatpush1.msra.mxu0 0.0
      %437 = vmatprep.subr.mxu0 0.0
      %438 = vmatpush1.msra.mxu0 0.0
      %439 = vmatprep.subr.mxu0 0.0
      %440 = vmatpush1.msra.mxu0 0.0
      %441 = vmatprep.subr.mxu0 0.0
      %442 = vmatpush1.msra.mxu0 0.0
      %443 = vmatprep.subr.mxu0 0.0
      %444 = vmatpush1.msra.mxu0 0.0
      %445 = vmatprep.subr.mxu0 0.0
      %446 = vmatpush1.msra.mxu0 0.0
      %447 = vmatprep.mubr.f32.mxu0 0.0
      %448 = vmatmul.mubr.f32.gmra.mrb[0].mxu0 %v348
      %v449 = vpop.f32.mrb[0].mxu0
      %v450 = vadd.f32 %v289, %v449
      %v451 = vpop.f32.mrb[0].mxu0
      %452 = vmatprep.mubr.f32.mxu0 0.0
      %453 = vmatmul.mubr.f32.gmra.mrb[0].mxu0 %v351
      %v454 = vpop.f32.mrb[0].mxu0
      %v455 = vadd.f32 %v294, %v454
      %v456 = vpop.f32.mrb[0].mxu0
      %457 = vmatprep.mubr.f32.mxu0 0.0
      %458 = vmatmul.mubr.f32.gmra.mrb[0].mxu0 %v354
      %v459 = vpop.f32.mrb[0].mxu0
      %v460 = vadd.f32 %v299, %v459
      %v461 = vpop.f32.mrb[0].mxu0
      %462 = vmatprep.mubr.f32.mxu0 0.0
      %463 = vmatmul.mubr.f32.gmra.mrb[0].mxu0 %v357
      %v464 = vpop.f32.mrb[0].mxu0
      %v465 = vadd.f32 %v304, %v464
      %v466 = vpop.f32.mrb[0].mxu0
      %467 = vmatprep.mubr.f32.mxu0 0.0
      %468 = vmatmul.mubr.f32.gmra.mrb[0].mxu0 %v360
      %v469 = vpop.f32.mrb[0].mxu0
      %v470 = vadd.f32 %v309, %v469
      %v471 = vpop.f32.mrb[0].mxu0
      %472 = vmatprep.mubr.f32.mxu0 0.0
      %473 = vmatmul.mubr.f32.gmra.mrb[0].mxu0 %v363
      %v474 = vpop.f32.mrb[0].mxu0
      %v475 = vadd.f32 %v314, %v474
      %v476 = vpop.f32.mrb[0].mxu0
      %477 = vmatprep.mubr.f32.mxu0 0.0
      %478 = vmatmul.mubr.f32.gmra.mrb[0].mxu0 %v366
      %v479 = vpop.f32.mrb[0].mxu0
      %v480 = vadd.f32 %v319, %v479
      %v481 = vpop.f32.mrb[0].mxu0
      %482 = vmatprep.mubr.f32.mxu0 0.0
      %483 = vmatmul.mubr.f32.gmra.mrb[0].mxu0 %v369
      %v484 = vpop.f32.mrb[0].mxu0
      %v485 = vadd.f32 %v324, %v484
      %v486 = vpop.f32.mrb[0].mxu0
      %487 = vmatprep.mubr.f32.mxu0 0.0
      %488 = vmatmul.mubr.f32.gmra.mrb[0].mxu0 %v372
      %v489 = vpop.f32.mrb[0].mxu0
      %v490 = vadd.f32 %v329, %v489
      %v491 = vpop.f32.mrb[0].mxu0
      %492 = vmatprep.mubr.f32.mxu0 0.0
      %493 = vmatmul.mubr.f32.gmra.mrb[0].mxu0 %v375
      %v494 = vpop.f32.mrb[0].mxu0
      %v495 = vadd.f32 %v334, %v494
      %v496 = vpop.f32.mrb[0].mxu0
      %497 = vmatprep.mubr.f32.mxu0 0.0
      %498 = vmatmul.mubr.f32.gmra.mrb[0].mxu0 %v378
      %v499 = vpop.f32.mrb[0].mxu0
      %v500 = vadd.f32 %v339, %v499
      %v501 = vpop.f32.mrb[0].mxu0
      %502 = vmatprep.mubr.f32.mxu0 0.0
      %503 = vmatmul.mubr.f32.gmra.mrb[0].mxu0 %v381
      %v504 = vpop.f32.mrb[0].mxu0
      %v505 = vadd.f32 %v344, %v504
      %v506 = vpop.f32.mrb[0].mxu0
      %507 = vdwg.mxu0
      %vm508 = vcmask 203776
      %v509 = vsel %vm508, %v450, 0.0
      %v510 = vsel %vm508, %v455, 0.0
      %v511 = vadd.f32 %v509, %v510
      %v512 = vsel %vm508, %v460, 0.0
      %v513 = vadd.f32 %v511, %v512
      %v514 = vsel %vm508, %v465, 0.0
      %v515 = vadd.f32 %v513, %v514
      %v516 = vsel %vm508, %v470, 0.0
      %v517 = vadd.f32 %v515, %v516
      %v518 = vsel %vm508, %v475, 0.0
      %v519 = vadd.f32 %v517, %v518
      %v520 = vsel %vm508, %v480, 0.0
      %v521 = vadd.f32 %v519, %v520
      %v522 = vsel %vm508, %v485, 0.0
      %v523 = vadd.f32 %v521, %v522
      %v524 = vsel %vm508, %v490, 0.0
      %v525 = vadd.f32 %v523, %v524
      %v526 = vsel %vm508, %v495, 0.0
      %v527 = vadd.f32 %v525, %v526
      %v528 = vsel %vm508, %v500, 0.0
      %v529 = vadd.f32 %v527, %v528
      %v530 = vsel %vm508, %v505, 0.0
      %v531 = vadd.f32 %v529, %v530
      %v532 = vrot.slane %v531, 4
      %v533 = vadd.f32 %v531, %v532
      %v534 = vrot.slane %v533, 2
      %v535 = vadd.f32 %v533, %v534
      %v536 = vrot.slane %v535, 1
      %v537 = vadd.f32 %v535, %v536
      %v538 = vrcp.pop 96.0
      %v539 = vmul.f32 %v537, %v538
      %v540 = vsub.f32 %v450, %v539
      %v541 = vsub.f32 %v455, %v539
      %v542 = vsub.f32 %v460, %v539
      %v543 = vsub.f32 %v465, %v539
      %v544 = vsub.f32 %v470, %v539
      %v545 = vsub.f32 %v475, %v539
      %v546 = vsub.f32 %v480, %v539
      %v547 = vsub.f32 %v485, %v539
      %v548 = vsub.f32 %v490, %v539
      %v549 = vsub.f32 %v495, %v539
      %v550 = vsub.f32 %v500, %v539
      %v551 = vsub.f32 %v505, %v539
      %v552 = vmul.f32 %v540, %v540
      %v553 = vmul.f32 %v541, %v541
      %v554 = vmul.f32 %v542, %v542
      %v555 = vmul.f32 %v543, %v543
      %v556 = vmul.f32 %v544, %v544
      %v557 = vmul.f32 %v545, %v545
      %v558 = vmul.f32 %v546, %v546
      %v559 = vmul.f32 %v547, %v547
      %v560 = vmul.f32 %v548, %v548
      %v561 = vmul.f32 %v549, %v549
      %v562 = vmul.f32 %v550, %v550
      %v563 = vmul.f32 %v551, %v551
      %v564 = vsel %vm508, %v552, 0.0
      %v565 = vsel %vm508, %v553, 0.0
      %v566 = vadd.f32 %v564, %v565
      %v567 = vsel %vm508, %v554, 0.0
      %v568 = vadd.f32 %v566, %v567
      %v569 = vsel %vm508, %v555, 0.0
      %v570 = vadd.f32 %v568, %v569
      %v571 = vsel %vm508, %v556, 0.0
      %v572 = vadd.f32 %v570, %v571
      %v573 = vsel %vm508, %v557, 0.0
      %v574 = vadd.f32 %v572, %v573
      %v575 = vsel %vm508, %v558, 0.0
      %v576 = vadd.f32 %v574, %v575
      %v577 = vsel %vm508, %v559, 0.0
      %v578 = vadd.f32 %v576, %v577
      %v579 = vsel %vm508, %v560, 0.0
      %v580 = vadd.f32 %v578, %v579
      %v581 = vsel %vm508, %v561, 0.0
      %v582 = vadd.f32 %v580, %v581
      %v583 = vsel %vm508, %v562, 0.0
      %v584 = vadd.f32 %v582, %v583
      %v585 = vsel %vm508, %v563, 0.0
      %v586 = vadd.f32 %v584, %v585
      %v587 = vrot.slane %v586, 4
      %v588 = vadd.f32 %v586, %v587
      %v589 = vrot.slane %v588, 2
      %v590 = vadd.f32 %v588, %v589
      %v591 = vrot.slane %v590, 1
      %v592 = vadd.f32 %v590, %v591
      %v593 = vmul.f32 %v592, %v538
      %v594 = vadd.f32 %v593, 1e-05
      %v595 = vrsqrt.pop %v594
      %v596 = vmul.f32 %v540, %v595
      %v597 = vmul.f32 %v541, %v595
      %v598 = vmul.f32 %v542, %v595
      %v599 = vmul.f32 %v543, %v595
      %v600 = vmul.f32 %v544, %v595
      %v601 = vmul.f32 %v545, %v595
      %v602 = vmul.f32 %v546, %v595
      %v603 = vmul.f32 %v547, %v595
      %v604 = vmul.f32 %v548, %v595
      %v605 = vmul.f32 %v549, %v595
      %v606 = vmul.f32 %v550, %v595
      %v607 = vmul.f32 %v551, %v595
      %v608 = vld [vmem:[%s3] sm:$0xff]
      %v609 = vld [vmem:[%s3 + $0x8] sm:$0xff]
      %v610 = vld [vmem:[%s3 + $0x10] sm:$0xff]
      %v611 = vld [vmem:[%s3 + $0x18] sm:$0xff]
      %v612 = vld [vmem:[%s3 + $0x20] sm:$0xff]
      %v613 = vld [vmem:[%s3 + $0x28] sm:$0xff]
      %v614 = vld [vmem:[%s3 + $0x30] sm:$0xff]
      %v615 = vld [vmem:[%s3 + $0x38] sm:$0xff]
      %v616 = vld [vmem:[%s3 + $0x40] sm:$0xff]
      %v617 = vld [vmem:[%s3 + $0x48] sm:$0xff]
      %v618 = vld [vmem:[%s3 + $0x50] sm:$0xff]
      %v619 = vld [vmem:[%s3 + $0x58] sm:$0xff]
      %621 = vset.pattern.permute.xlu0 0
      %622 = vperm.xlu0 %621, %v608
      %v623 = vpop.permute.xlu0 %622
      %626 = vset.pattern.permute.xlu0 0
      %627 = vperm.xlu0 %626, %v609
      %v628 = vpop.permute.xlu0 %627
      %631 = vset.pattern.permute.xlu0 0
      %632 = vperm.xlu0 %631, %v610
      %v633 = vpop.permute.xlu0 %632
      %636 = vset.pattern.permute.xlu0 0
      %637 = vperm.xlu0 %636, %v611
      %v638 = vpop.permute.xlu0 %637
      %641 = vset.pattern.permute.xlu0 0
      %642 = vperm.xlu0 %641, %v612
      %v643 = vpop.permute.xlu0 %642
      %646 = vset.pattern.permute.xlu0 0
      %647 = vperm.xlu0 %646, %v613
      %v648 = vpop.permute.xlu0 %647
      %651 = vset.pattern.permute.xlu0 0
      %652 = vperm.xlu0 %651, %v614
      %v653 = vpop.permute.xlu0 %652
      %656 = vset.pattern.permute.xlu0 0
      %657 = vperm.xlu0 %656, %v615
      %v658 = vpop.permute.xlu0 %657
      %661 = vset.pattern.permute.xlu0 0
      %662 = vperm.xlu0 %661, %v616
      %v663 = vpop.permute.xlu0 %662
      %666 = vset.pattern.permute.xlu0 0
      %667 = vperm.xlu0 %666, %v617
      %v668 = vpop.permute.xlu0 %667
      %671 = vset.pattern.permute.xlu0 0
      %672 = vperm.xlu0 %671, %v618
      %v673 = vpop.permute.xlu0 %672
      %676 = vset.pattern.permute.xlu0 0
      %677 = vperm.xlu0 %676, %v619
      %v678 = vpop.permute.xlu0 %677
      %v680 = vmul.f32 %v596, %v623
      %v681 = vmul.f32 %v597, %v628
      %v682 = vmul.f32 %v598, %v633
      %v683 = vmul.f32 %v599, %v638
      %v684 = vmul.f32 %v600, %v643
      %v685 = vmul.f32 %v601, %v648
      %v686 = vmul.f32 %v602, %v653
      %v687 = vmul.f32 %v603, %v658
      %v688 = vmul.f32 %v604, %v663
      %v689 = vmul.f32 %v605, %v668
      %v690 = vmul.f32 %v606, %v673
      %v691 = vmul.f32 %v607, %v678
      %v692 = vld [vmem:[%s4] sm:$0xff]
      %v693 = vld [vmem:[%s4 + $0x8] sm:$0xff]
      %v694 = vld [vmem:[%s4 + $0x10] sm:$0xff]
      %v695 = vld [vmem:[%s4 + $0x18] sm:$0xff]
      %v696 = vld [vmem:[%s4 + $0x20] sm:$0xff]
      %v697 = vld [vmem:[%s4 + $0x28] sm:$0xff]
      %v698 = vld [vmem:[%s4 + $0x30] sm:$0xff]
      %v699 = vld [vmem:[%s4 + $0x38] sm:$0xff]
      %v700 = vld [vmem:[%s4 + $0x40] sm:$0xff]
      %v701 = vld [vmem:[%s4 + $0x48] sm:$0xff]
      %v702 = vld [vmem:[%s4 + $0x50] sm:$0xff]
      %v703 = vld [vmem:[%s4 + $0x58] sm:$0xff]
      %705 = vset.pattern.permute.xlu0 0
      %706 = vperm.xlu0 %705, %v692
      %v707 = vpop.permute.xlu0 %706
      %710 = vset.pattern.permute.xlu0 0
      %711 = vperm.xlu0 %710, %v693
      %v712 = vpop.permute.xlu0 %711
      %715 = vset.pattern.permute.xlu0 0
      %716 = vperm.xlu0 %715, %v694
      %v717 = vpop.permute.xlu0 %716
      %720 = vset.pattern.permute.xlu0 0
      %721 = vperm.xlu0 %720, %v695
      %v722 = vpop.permute.xlu0 %721
      %725 = vset.pattern.permute.xlu0 0
      %726 = vperm.xlu0 %725, %v696
      %v727 = vpop.permute.xlu0 %726
      %730 = vset.pattern.permute.xlu0 0
      %731 = vperm.xlu0 %730, %v697
      %v732 = vpop.permute.xlu0 %731
      %735 = vset.pattern.permute.xlu0 0
      %736 = vperm.xlu0 %735, %v698
      %v737 = vpop.permute.xlu0 %736
      %740 = vset.pattern.permute.xlu0 0
      %741 = vperm.xlu0 %740, %v699
      %v742 = vpop.permute.xlu0 %741
      %745 = vset.pattern.permute.xlu0 0
      %746 = vperm.xlu0 %745, %v700
      %v747 = vpop.permute.xlu0 %746
      %750 = vset.pattern.permute.xlu0 0
      %751 = vperm.xlu0 %750, %v701
      %v752 = vpop.permute.xlu0 %751
      %755 = vset.pattern.permute.xlu0 0
      %756 = vperm.xlu0 %755, %v702
      %v757 = vpop.permute.xlu0 %756
      %760 = vset.pattern.permute.xlu0 0
      %761 = vperm.xlu0 %760, %v703
      %v762 = vpop.permute.xlu0 %761
      %v764 = vadd.f32 %v680, %v707
      %v765 = vadd.f32 %v681, %v712
      %v766 = vadd.f32 %v682, %v717
      %v767 = vadd.f32 %v683, %v722
      %v768 = vadd.f32 %v684, %v727
      %v769 = vadd.f32 %v685, %v732
      %v770 = vadd.f32 %v686, %v737
      %v771 = vadd.f32 %v687, %v742
      %v772 = vadd.f32 %v688, %v747
      %v773 = vadd.f32 %v689, %v752
      %v774 = vadd.f32 %v690, %v757
      %v775 = vadd.f32 %v691, %v762
      %776 = vst.msk [vmem:[%s255] sm:$0xff] %vm508, %v764
      %777 = vst.msk [vmem:[%s255 + $0x8] sm:$0xff] %vm508, %v765
      %778 = vst.msk [vmem:[%s255 + $0x10] sm:$0xff] %vm508, %v766
      %779 = vst.msk [vmem:[%s255 + $0x18] sm:$0xff] %vm508, %v767
      %780 = vst.msk [vmem:[%s255 + $0x20] sm:$0xff] %vm508, %v768
      %781 = vst.msk [vmem:[%s255 + $0x28] sm:$0xff] %vm508, %v769
      %782 = vst.msk [vmem:[%s255 + $0x30] sm:$0xff] %vm508, %v770
      %783 = vst.msk [vmem:[%s255 + $0x38] sm:$0xff] %vm508, %v771
      %784 = vst.msk [vmem:[%s255 + $0x40] sm:$0xff] %vm508, %v772
      %785 = vst.msk [vmem:[%s255 + $0x48] sm:$0xff] %vm508, %v773
      %786 = vst.msk [vmem:[%s255 + $0x50] sm:$0xff] %vm508, %v774
      %787 = vst.msk [vmem:[%s255 + $0x58] sm:$0xff] %vm508, %v775
      %p788 = scmp.lt.s32.totalorder %s20, 1
      %s789 = scalar_select %p788, %s20, 1
      %p790 = scmp.lt.s32.totalorder %s21, 0
      %s791 = scalar_select %p790, %s21, 0
      %s792 = smul.addr %s789, 12
      %s793 = sadd.s32 %s791, %s792
      %s794 = smul.addr %s793, 8
      %s795 = scalar_lea.vmem %s5, %s794
      // Predicated region
      $region41: #{patch_embed_forward.1} parent=39 // pred_check
        %p796 = pneg %p160
      $region42: #{patch_embed_forward.1} parent=39 // pred_check_branch
        %798 = sbr.rel (%p796) target = $region44
      $region43: #{patch_embed_forward.1} parent=39 // pred_region
        _
      $region44: #{patch_embed_forward.1} parent=39 // pred_fallthru
        _
    $region40: #{patch_embed_forward.1} parent=5 // pred_fallthru
      _
    %p799 = scmp.le.s32.totalorder 2, %s11
    // Predicated region
    $region45: #{patch_embed_forward.1} parent=5 // pred_check
      %p800 = pneg %p799
    $region46: #{patch_embed_forward.1} parent=5 // pred_check_branch
      %802 = sbr.rel (%p800) target = $region48
    $region47: #{patch_embed_forward.1} parent=5 // pred_region
      %s803 = ssub.s32 %s11, 2
      // Predicated region
      $region49: #{patch_embed_forward.1} parent=47 // pred_check
        %p804 = pneg %p166
      $region50: #{patch_embed_forward.1} parent=47 // pred_check_branch
        %806 = sbr.rel (%p804) target = $region52
      $region51: #{patch_embed_forward.1} parent=47 // pred_region
        %p807 = scmp.lt.s32.totalorder %s22, 1
        %s808 = scalar_select %p807, %s22, 1
        %p809 = scmp.lt.s32.totalorder %s23, 0
        %s810 = scalar_select %p809, %s23, 0
        %s811 = smul.addr %s808, 12
        %s812 = sadd.s32 %s810, %s811
        %s813 = smul.addr %s812, 8
        %s814 = scalar_lea.vmem %s5, %s813
      $region52: #{patch_embed_forward.1} parent=47 // pred_fallthru
        _
    $region48: #{patch_embed_forward.1} parent=5 // pred_fallthru
      _
  $region6: #{patch_embed_forward.1} parent=0 // loop_footer
    %s15 = sadd.s32 1, %s11
  $region7: #{patch_embed_forward.1} parent=0 // loop_footer_branch
    %10 = sbr.rel target = $region3
  $region8: #{patch_embed_forward.1} parent=0 // loop_exit
    _

</llo_original>
